<compile_context>
chip_gen: v5e
topology: v5e:2x2
jax: 0.10.0
libtpu: 0.0.40
codegen_flags: <defaults>
</compile_context>

<pallas_src>
import functools

import jax
import jax.numpy as jnp
from jax.experimental import pallas as pl
from jax.experimental.pallas import tpu as pltpu

LANE = 128
SUBLANE = 8
BLOCK_R_MAX = 2048  # 2048 * 128 * 4 B = 1 MiB per f32 input block


def _loss_block(pred, target, log_target):
    # TODO(synk): matches the module exactly (incl. the +1e-7 epsilon), which
    # differs slightly from torch.nn.KLDivLoss's xlogy-style 0*log0 handling.
    if log_target:
        return jnp.exp(target) * (target - pred)
    return target * (jnp.log(target + 1e-07) - pred)


def _round_up(x, m):
    return ((x + m - 1) // m) * m


def _kl_partial_sum_kernel(pred_ref, target_ref, out_ref, *,
                           log_target, block_r, valid_rows):
    loss = _loss_block(
        pred_ref[...].astype(jnp.float32),
        target_ref[...].astype(jnp.float32),
        log_target,
    )
    if valid_rows % block_r != 0:
        # Ragged last block: rows past `valid_rows` hold unspecified data;
        # select them to zero so they don't pollute the sum.
        row = (pl.program_id(0) * block_r
               + jax.lax.broadcasted_iota(jnp.int32, loss.shape, 0))
        loss = jnp.where(row < valid_rows, loss, 0.0)
    # Reduce (block_r, 128) -> (8, 128) with pure VPU vreg adds (the reshape
    # splits the sublane axis on 8-row boundaries, so it is layout-free).
    partial = jnp.sum(loss.reshape(block_r // SUBLANE, SUBLANE, LANE), axis=0)
    out_ref[...] = partial[None]


def _kl_elem_kernel(pred_ref, target_ref, out_ref, *, log_target):
    out_ref[...] = _loss_block(
        pred_ref[...].astype(jnp.float32),
        target_ref[...].astype(jnp.float32),
        log_target,
    ).astype(out_ref.dtype)


def _compiler_params():
    return pltpu.CompilerParams(
        dimension_semantics=("parallel",),
        # ~4-6 MiB double-buffered working set at BLOCK_R_MAX; request 32 MiB
        # for headroom (still within v7x's 64 MiB physical VMEM).
        vmem_limit_bytes=32 * 1024 * 1024,
    )


@functools.partial(jax.jit, static_argnames=("reduction", "log_target"))
def kl_div_loss(pred, target, reduction="mean", log_target=False):
    """Pallas equivalent of CustomKLDivLoss.forward(pred, target)."""
    n = pred.size
    flat_p = pred.reshape(-1)
    flat_t = target.reshape(-1)

    n_bulk = (n // LANE) * LANE          # kernel covers the 128-aligned bulk
    rows = n_bulk // LANE
    block_r = min(BLOCK_R_MAX, _round_up(max(rows, 1), SUBLANE))
    num_blocks = -(-rows // block_r) if rows else 0
    in_spec = pl.BlockSpec((block_r, LANE), lambda i: (i, 0))

    if reduction == "none":
        if rows:
            bulk_out = pl.pallas_call(
                functools.partial(_kl_elem_kernel, log_target=log_target),
                out_shape=jax.ShapeDtypeStruct((rows, LANE), pred.dtype),
                grid_spec=pltpu.PrefetchScalarGridSpec(
                    num_scalar_prefetch=0,
                    grid=(num_blocks,),
                    in_specs=[in_spec, in_spec],
                    out_specs=in_spec,
                ),
                compiler_params=_compiler_params(),
            )(flat_p[:n_bulk].reshape(rows, LANE),
              flat_t[:n_bulk].reshape(rows, LANE)).reshape(-1)
        else:
            bulk_out = jnp.zeros((0,), pred.dtype)
        if n_bulk < n:
            tail = _loss_block(flat_p[n_bulk:].astype(jnp.float32),
                               flat_t[n_bulk:].astype(jnp.float32),
                               log_target).astype(pred.dtype)
            bulk_out = jnp.concatenate([bulk_out, tail])
        return bulk_out.reshape(pred.shape)

    # --- sum / mean / batchmean: per-block (8,128) partials, finished here ---
    if rows:
        partials = pl.pallas_call(
            functools.partial(_kl_partial_sum_kernel, log_target=log_target,
                              block_r=block_r, valid_rows=rows),
            out_shape=jax.ShapeDtypeStruct((num_blocks, SUBLANE, LANE),
                                           jnp.float32),
            grid_spec=pltpu.PrefetchScalarGridSpec(
                num_scalar_prefetch=0,
                grid=(num_blocks,),
                in_specs=[in_spec, in_spec],
                out_specs=pl.BlockSpec((1, SUBLANE, LANE),
                                       lambda i: (i, 0, 0)),
            ),
            compiler_params=_compiler_params(),
        )(flat_p[:n_bulk].reshape(rows, LANE),
          flat_t[:n_bulk].reshape(rows, LANE))
        total = jnp.sum(partials)
    else:
        total = jnp.float32(0.0)

    if n_bulk < n:  # <128-element tail handled outside the kernel (no pad copy)
        total = total + jnp.sum(
            _loss_block(flat_p[n_bulk:].astype(jnp.float32),
                        flat_t[n_bulk:].astype(jnp.float32),
                        log_target))

    if reduction == "batchmean":
        out = total / pred.shape[0]
    elif reduction == "mean":
        out = total / n
    elif reduction == "sum":
        out = total
    else:
        raise ValueError(f"unknown reduction: {reduction}")
    # Match the input dtype (as torch would) while accumulating in f32.
    return out.astype(pred.dtype)


def _reference(pred, target, reduction="mean", log_target=False):
    if log_target:
        loss = jnp.exp(target) * (target - pred)
    else:
        loss = target * (jnp.log(target + 1e-07) - pred)
    if reduction == "batchmean":
        return loss.sum() / pred.shape[0]
    elif reduction == "mean":
        return loss.mean()
    elif reduction == "sum":
        return loss.sum()
    return loss


if __name__ == "__main__":
    key = jax.random.PRNGKey(0)
    k1, k2 = jax.random.split(key)
    B, C, H, W = 2, 4, 16, 16

    # pred: log-probabilities, target: probabilities (typical KLDivLoss usage)
    pred_logits = jax.random.normal(k1, (B, C, H, W), dtype=jnp.float32)
    target_logits = jax.random.normal(k2, (B, C, H, W), dtype=jnp.float32)
    pred = jax.nn.log_softmax(pred_logits, axis=1)
    target = jax.nn.softmax(target_logits, axis=1)

    # default module config: reduction='mean', log_target=False
    out = jax.block_until_ready(
        kl_div_loss(pred, target, reduction="mean", log_target=False))
    ref = _reference(pred, target, reduction="mean", log_target=False)
    assert jnp.allclose(out, ref, atol=1e-5, rtol=1e-5), (out, ref)

    # other reductions
    for red in ("sum", "batchmean", "none"):
        o = jax.block_until_ready(
            kl_div_loss(pred, target, reduction=red, log_target=False))
        r = _reference(pred, target, reduction=red, log_target=False)
        assert jnp.allclose(o, r, atol=1e-5, rtol=1e-5), red

    # log_target=True path
    o_lt = jax.block_until_ready(
        kl_div_loss(pred, jnp.log(target), reduction="mean", log_target=True))
    r_lt = _reference(pred, jnp.log(target), reduction="mean", log_target=True)
    assert jnp.allclose(o_lt, r_lt, atol=1e-5, rtol=1e-5), (o_lt, r_lt)

    print("KERNEL_OK")
</pallas_src>

<mosaic_0001>
module attributes {stable_mosaic.version = 11 : i64} {
  func.func @_kl_partial_sum_kernel(%arg0: i32, %arg1: memref<16x128xf32, #tpu.memory_space<vmem>>, %arg2: memref<16x128xf32, #tpu.memory_space<vmem>>, %arg3: memref<1x8x128xf32, #tpu.memory_space<vmem>>) attributes {dimension_semantics = [#tpu.dimension_semantics<parallel>], iteration_bounds = array<i64: 1>, scalar_prefetch = 0 : i64, scratch_operands = 0 : i64, tpu.core_type = #tpu.core_type<tc>, window_params = [{transform_indices = @transform_0, window_bounds = array<i64: 16, 128>}, {transform_indices = @transform_1, window_bounds = array<i64: 16, 128>}, {transform_indices = @transform_2, window_bounds = array<i64: 1, 8, 128>}]} {
    %c0 = arith.constant 0 : index
    %c0_0 = arith.constant 0 : index
    %0 = vector.load %arg1[%c0, %c0_0] : memref<16x128xf32, #tpu.memory_space<vmem>>, vector<16x128xf32>
    %c0_1 = arith.constant 0 : index
    %c0_2 = arith.constant 0 : index
    %1 = vector.load %arg2[%c0_1, %c0_2] : memref<16x128xf32, #tpu.memory_space<vmem>>, vector<16x128xf32>
    %cst = arith.constant 1.000000e-07 : f32
    %2 = vector.broadcast %cst : f32 to vector<16x128xf32>
    %3 = arith.addf %1, %2 : vector<16x128xf32>
    %4 = math.log %3 : vector<16x128xf32>
    %5 = arith.subf %4, %0 : vector<16x128xf32>
    %6 = arith.mulf %1, %5 : vector<16x128xf32>
    %7 = vector.shape_cast %6 : vector<16x128xf32> to vector<2x8x128xf32>
    %cst_3 = arith.constant dense<0.000000e+00> : vector<8x128xf32>
    %8 = vector.multi_reduction <add>, %7, %cst_3 [0] : vector<2x8x128xf32> to vector<8x128xf32>
    %9 = vector.shape_cast %8 : vector<8x128xf32> to vector<1x8x128xf32>
    %c0_4 = arith.constant 0 : index
    %c0_5 = arith.constant 0 : index
    %c0_6 = arith.constant 0 : index
    %10 = vector.load %arg3[%c0_4, %c0_5, %c0_6] : memref<1x8x128xf32, #tpu.memory_space<vmem>>, vector<1x8x128xf32>
    tpu.vector_store %arg3[%c0_4, %c0_5, %c0_6], %9 {strides = array<i32>} : memref<1x8x128xf32, #tpu.memory_space<vmem>>, vector<1x8x128xf32>,
    return
  }
  func.func @transform_0(%arg0: i32) -> (i32, i32) {
    %c0_i32 = arith.constant 0 : i32
    %c0_i32_0 = arith.constant 0 : i32
    return %arg0, %c0_i32 : i32, i32
  }
  func.func @transform_1(%arg0: i32) -> (i32, i32) {
    %c0_i32 = arith.constant 0 : i32
    %c0_i32_0 = arith.constant 0 : i32
    return %arg0, %c0_i32 : i32, i32
  }
  func.func @transform_2(%arg0: i32) -> (i32, i32, i32) {
    %c0_i32 = arith.constant 0 : i32
    %c0_i32_0 = arith.constant 0 : i32
    %c0_i32_1 = arith.constant 0 : i32
    return %arg0, %c0_i32, %c0_i32_0 : i32, i32, i32
  }
}

</mosaic_0001>

<llo_original>
// kernel: kl_div_loss.1
$region0: #{kl_div_loss.1}
  #allocation0 [shape = 'u32[]', space=smem, size = 0x4, offset = 0x4, fixed_abs, tag = 'smem constant byte address 0x4 - core index']
  #allocation1 [shape = 'u32[72,128]{1,0:T(1,128)}', space=vmem, size = 0x9000, scoped, tag = 'internal scratch']
  %s0 = inlined_call_operand.vmem [shape: f32[16,128], index: 0, kind: input, shape index: {}]
  %s1 = inlined_call_operand.vmem [shape: f32[16,128], index: 1, kind: input, shape index: {}]
  %s2 = inlined_call_operand.vmem [shape: f32[1,8,128], index: 2, kind: output, shape index: {}]
  %s3 = sld [smem:[#allocation0]]
  $region18: #{kl_div_loss.1} parent=0
    _
  %s5 = ssub.s32 1, %s3
  %s6 = scalar_select 0, %s5, %s3
  // Predicated region
  $region2: #{kl_div_loss.1} parent=0 // pred_check
    _
  $region3: #{kl_div_loss.1} parent=0 // pred_check_branch
    %8 = sbr.rel (0) target = $region5
  $region4: #{kl_div_loss.1} parent=0 // pred_region
    _
  $region5: #{kl_div_loss.1} parent=0 // pred_fallthru
    _
  // Predicated region
  $region6: #{kl_div_loss.1} parent=0 // pred_check
    _
  $region7: #{kl_div_loss.1} parent=0 // pred_check_branch
    %10 = sbr.rel (0) target = $region9
  $region8: #{kl_div_loss.1} parent=0 // pred_region
    _
  $region9: #{kl_div_loss.1} parent=0 // pred_fallthru
    _
  %v11 = vld [vmem:[%s0] sm:$0xff]
  %v12 = vld [vmem:[%s0 + $0x8] sm:$0xff]
  %v13 = vld [vmem:[%s1] sm:$0xff]
  %v14 = vld [vmem:[%s1 + $0x8] sm:$0xff]
  %v15 = vadd.f32 %v13, 1e-07
  %v16 = vadd.f32 %v14, 1e-07
  %v17 = vlog2.pop %v15
  %v18 = vmul.f32 %v17, 0.6931472
  %v19 = vlog2.pop %v16
  %v20 = vmul.f32 %v19, 0.6931472
  %v21 = vsub.f32 %v18, %v11
  %v22 = vsub.f32 %v20, %v12
  %v23 = vmul.f32 %v13, %v21
  %v24 = vmul.f32 %v14, %v22
  %v25 = vadd.f32 %v23, %v24
  %26 = vst [vmem:[%s2] sm:$0xff] %v25
  // Predicated region
  $region10: #{kl_div_loss.1} parent=0 // pred_check
    _
  $region11: #{kl_div_loss.1} parent=0 // pred_check_branch
    %28 = sbr.rel (0) target = $region13
  $region12: #{kl_div_loss.1} parent=0 // pred_region
    _
  $region13: #{kl_div_loss.1} parent=0 // pred_fallthru
    _
  // Predicated region
  $region14: #{kl_div_loss.1} parent=0 // pred_check
    _
  $region15: #{kl_div_loss.1} parent=0 // pred_check_branch
    %30 = sbr.rel (0) target = $region17
  $region16: #{kl_div_loss.1} parent=0 // pred_region
    _
  $region17: #{kl_div_loss.1} parent=0 // pred_fallthru
    _

</llo_original>
